<compile_context>
chip_gen: v5e
topology: v5e:2x2
jax: 0.10.0
libtpu: 0.0.40
codegen_flags: <defaults>
</compile_context>

<pallas_src>
import math

import jax
import jax.numpy as jnp
from jax.experimental import pallas as pl
from jax.experimental.pallas import tpu as pltpu


LANE = 128
_RESIDENT_FEATURE_BYTES = 12 * 1024 * 1024   # single-copy budget for VMEM-resident features
_VMEM_LIMIT_BYTES = 48 * 1024 * 1024         # > v5e(16)/v6e,v7x(32) scoped defaults, < v7x 64 MiB phys


def _round_up(x, m):
    return ((x + m - 1) // m) * m


def _pad_cast(x, shape, dtype):
    """Single-pass cast + zero-pad; no-op pad when already aligned."""
    x = x.astype(dtype)
    pads = [(0, s - d) for s, d in zip(shape, x.shape)]
    if any(hi for _, hi in pads):
        x = jnp.pad(x, pads)
    return x


def _gnn_kernel(refs, *, tm, tk, feats_resident, has_diag):
    """Grid = (row tiles of Np, reduction tiles of Np).

    acc accumulates h = laplacian @ features for the current row tile; on the
    last reduction step the fused (small) output transform is applied.
    """
    it = iter(refs)
    lap_ref = next(it)                                    # (tm, tk)         streamed
    feat_ref = next(it)                                   # (Np, inF_p) resident | (tk, inF_p) streamed
    fi_ref = feat_ref if feats_resident else next(it)     # (tm, inF_p)      row tile (streamed path)
    diag_ref = next(it) if has_diag else None             # (tm, 1)          diag(selfLoop)
    w_ref = next(it)                                      # (2*inF_p, outF_p) = [W_T^T ; W_I^T], f32
    bias_ref = next(it)                                   # (1, outF_p)       = b_T + b_I, f32
    out_ref = next(it)                                    # (tm, outF_p)
    acc_ref = next(it)                                    # (tm, inF_p) f32 scratch

    i = pl.program_id(0)
    k = pl.program_id(1)

    @pl.when(k == 0)
    def _init():
        acc_ref[...] = jnp.zeros_like(acc_ref)

    # Propagation partial sum: acc += lap[i, k] @ F[k]   (MXU, f32 accumulation).
    if feats_resident:
        fk = feat_ref[pl.ds(pl.multiple_of(k * tk, tk), tk), :]
    else:
        fk = feat_ref[...]
    acc_ref[...] += jnp.dot(lap_ref[...], fk, preferred_element_type=jnp.float32)

    @pl.when(k == pl.num_programs(1) - 1)
    def _finalize():
        h = acc_ref[...]                                              # (tm, inF_p) = lap @ F
        if feats_resident:
            f = feat_ref[pl.ds(pl.multiple_of(i * tm, tm), tm), :]
        else:
            f = fi_ref[...]
        f = f.astype(jnp.float32)
        if has_diag:
            a = h + diag_ref[...] * f       # (lap + diag(selfLoop)) @ F
        else:
            a = h + f                       # identity selfLoop (source-model case)
        b = h * f                           # inter_feature = (lap @ F) * F
        # Single fused output GEMM (f32 lhs + f32 weights for accuracy):
        ab = jnp.concatenate([a, b], axis=-1)                         # (tm, 2*inF_p)
        out = jnp.dot(ab, w_ref[...], preferred_element_type=jnp.float32) + bias_ref[...]
        out_ref[...] = out.astype(out_ref.dtype)


def gnn_layer(laplacian, self_loop, features, wT, bT, wI, bI, *,
              compute_dtype=jnp.bfloat16, identity_self_loop=True):
    """GNNLayer.forward.

    laplacian : (N, N)      float32
    self_loop : (N, N)      float32, diagonal (identity in the source model)
    features  : (N, inF)    float32
    wT, wI    : (outF, inF) float32   (PyTorch nn.Linear weight layout)
    bT, bI    : (outF,)     float32
    returns   : (N, outF)   float32

    identity_self_loop=True ignores `self_loop` and uses the identity (what the
    source model always passes); set False to use diag(self_loop).
    # TODO(synk): only the diagonal of selfLoop is honored; a fully general
    # dense selfLoop would need a second N x N propagation GEMM.
    """
    N, inF = features.shape
    outF = wT.shape[0]

    inF_p = _round_up(inF, LANE)
    outF_p = _round_up(outF, LANE)

    # ---- tile selection: never fall back to 128-wide pipeline tiles ---------
    Np_lane = _round_up(N, LANE)
    if Np_lane <= 512:
        Np = Np_lane
        tm = Np
        tk = Np
    else:
        Np = _round_up(N, 512)
        tm = 512                                             # Np // tm >= 2 keeps both v7x TCs busy
        tk = max(t for t in (2048, 1024, 512) if Np % t == 0)

    itemsize = jnp.dtype(compute_dtype).itemsize
    feats_resident = Np * inF_p * itemsize <= _RESIDENT_FEATURE_BYTES
    if not feats_resident:
        # Very wide feature matrices: shrink the reduction tile so the streamed
        # (tk, inF_p) feature block stays within VMEM budget.
        while tk > 512 and (tm * tk + tk * inF_p) * itemsize * 2 > 24 * 1024 * 1024:
            tk //= 2

    f32 = jnp.float32
    # Single-pass cast+pad (no extra zeros-init / update-slice HBM passes on N^2 data).
    lap_c = _pad_cast(laplacian, (Np, Np), compute_dtype)
    feat_c = _pad_cast(features, (Np, inF_p), compute_dtype)
    # Fused output transform operand [W_T^T ; W_I^T] and fused bias (tiny, kept f32).
    w_fused = jnp.zeros((2 * inF_p, outF_p), f32)
    w_fused = w_fused.at[:inF, :outF].set(wT.T.astype(f32))
    w_fused = w_fused.at[inF_p:inF_p + inF, :outF].set(wI.T.astype(f32))
    bias_p = _pad_cast((bT + bI).astype(f32).reshape(1, outF), (1, outF_p), f32)

    grid = (Np // tm, Np // tk)
    has_diag = not identity_self_loop

    in_arrays = [lap_c, feat_c]
    in_specs = [pl.BlockSpec((tm, tk), lambda i, k: (i, k))]           # laplacian tile (streamed)
    if feats_resident:
        in_specs.append(pl.BlockSpec((Np, inF_p), lambda i, k: (0, 0)))   # features, VMEM-resident
    else:
        in_specs.append(pl.BlockSpec((tk, inF_p), lambda i, k: (k, 0)))   # features (reduction stream)
        in_arrays.append(feat_c)
        in_specs.append(pl.BlockSpec((tm, inF_p), lambda i, k: (i, 0)))   # features (row tile)
    if has_diag:
        diag_p = _pad_cast(jnp.diagonal(self_loop).reshape(N, 1), (Np, 1), f32)
        in_arrays.append(diag_p)
        in_specs.append(pl.BlockSpec((tm, 1), lambda i, k: (i, 0)))       # diag(selfLoop)
    in_arrays += [w_fused, bias_p]
    in_specs += [
        pl.BlockSpec((2 * inF_p, outF_p), lambda i, k: (0, 0)),           # fused weights (resident)
        pl.BlockSpec((1, outF_p), lambda i, k: (0, 0)),                   # fused bias (resident)
    ]

    def kernel_fn(*refs):
        _gnn_kernel(refs, tm=tm, tk=tk,
                    feats_resident=feats_resident, has_diag=has_diag)

    out_p = pl.pallas_call(
        kernel_fn,
        out_shape=jax.ShapeDtypeStruct((Np, outF_p), f32),
        grid_spec=pltpu.PrefetchScalarGridSpec(
            num_scalar_prefetch=0,
            grid=grid,
            in_specs=in_specs,
            out_specs=pl.BlockSpec((tm, outF_p), lambda i, k: (i, 0)),
            scratch_shapes=[pltpu.VMEM((tm, inF_p), jnp.float32)],
        ),
        compiler_params=pltpu.CompilerParams(
            dimension_semantics=("parallel", "arbitrary"),
            vmem_limit_bytes=_VMEM_LIMIT_BYTES),
    )(*in_arrays)

    return out_p[:N, :outF]


def init_linear_params(key, inF, outF):
    """Deterministic init mimicking torch.nn.Linear default (uniform +-1/sqrt(inF))."""
    kw, kb = jax.random.split(key)
    bound = 1.0 / math.sqrt(inF)
    w = jax.random.uniform(kw, (outF, inF), jnp.float32, -bound, bound)  # PyTorch layout
    b = jax.random.uniform(kb, (outF,), jnp.float32, -bound, bound)
    return w, b


if __name__ == "__main__":
    # Small shapes consistent with the module: N graph nodes, inF -> outF.
    N, inF, outF = 16, 32, 32

    key = jax.random.PRNGKey(0)
    k_feat, k_lap, k_T, k_I = jax.random.split(key, 4)

    features = jax.random.normal(k_feat, (N, inF), jnp.float32)
    # Dense "sparse" Laplacian-like matrix and identity self-loop.
    laplacian = jax.random.uniform(k_lap, (N, N), jnp.float32, 0.0, 0.2)
    self_loop = jnp.eye(N, dtype=jnp.float32)

    wT, bT = init_linear_params(k_T, inF, outF)
    wI, bI = init_linear_params(k_I, inF, outF)

    # Reference: exact GNNLayer.forward math in plain JAX (f32).
    L1 = laplacian + self_loop
    part1 = (L1 @ features) @ wT.T + bT
    inter = (laplacian @ features) * features
    part2 = inter @ wI.T + bI
    ref = part1 + part2

    # Default fast path: bf16 operands for the big streams, f32 accumulation.
    out_bf16 = gnn_layer(laplacian, self_loop, features, wT, bT, wI, bI)
    jax.block_until_ready(out_bf16)
    assert out_bf16.shape == ref.shape
    assert jnp.allclose(out_bf16, ref, atol=1e-1, rtol=1e-1), "bf16 path mismatch vs reference"

    # Full-precision path: tight reference check.
    out_f32 = gnn_layer(laplacian, self_loop, features, wT, bT, wI, bI,
                        compute_dtype=jnp.float32)
    jax.block_until_ready(out_f32)
    assert out_f32.shape == ref.shape
    assert jnp.allclose(out_f32, ref, atol=1e-3, rtol=1e-3), "f32 path mismatch vs reference"

    print("KERNEL_OK")
</pallas_src>

<mosaic_0001>
module attributes {stable_mosaic.version = 11 : i64} {
  func.func @kernel_fn(%arg0: i32, %arg1: i32, %arg2: memref<128x128xbf16, #tpu.memory_space<vmem>>, %arg3: memref<128x128xbf16, #tpu.memory_space<vmem>>, %arg4: memref<256x128xf32, #tpu.memory_space<vmem>>, %arg5: memref<1x128xf32, #tpu.memory_space<vmem>>, %arg6: memref<128x128xf32, #tpu.memory_space<vmem>>, %arg7: memref<128x128xf32, #tpu.memory_space<vmem>>) attributes {dimension_semantics = [#tpu.dimension_semantics<parallel>, #tpu.dimension_semantics<arbitrary>], iteration_bounds = array<i64: 1, 1>, scalar_prefetch = 0 : i64, scratch_operands = 1 : i64, tpu.core_type = #tpu.core_type<tc>, window_params = [{transform_indices = @transform_0, window_bounds = array<i64: 128, 128>}, {pipeline_mode = #tpu.pipeline_mode<synchronous>, transform_indices = @transform_1, window_bounds = array<i64: 128, 128>}, {pipeline_mode = #tpu.pipeline_mode<synchronous>, transform_indices = @transform_2, window_bounds = array<i64: 256, 128>}, {pipeline_mode = #tpu.pipeline_mode<synchronous>, transform_indices = @transform_3, window_bounds = array<i64: 1, 128>}, {transform_indices = @transform_4, window_bounds = array<i64: 128, 128>}]} {
    %c0_i32 = arith.constant 0 : i32
    %0 = arith.cmpi eq, %arg1, %c0_i32 : i32
    %1 = arith.extui %0 : i1 to i32
    %c0_i32_0 = arith.constant 0 : i32
    %2 = arith.cmpi ne, %1, %c0_i32_0 : i32
    scf.if %2 {
      %cst_9 = arith.constant 0.000000e+00 : f32
      %15 = vector.broadcast %cst_9 : f32 to vector<128x128xf32>
      %c0_10 = arith.constant 0 : index
      %c0_11 = arith.constant 0 : index
      %16 = vector.load %arg7[%c0_10, %c0_11] : memref<128x128xf32, #tpu.memory_space<vmem>>, vector<128x128xf32>
      tpu.vector_store %arg7[%c0_10, %c0_11], %15 {strides = array<i32>} : memref<128x128xf32, #tpu.memory_space<vmem>>, vector<128x128xf32>,
    } else {
    }
    %c128_i32 = arith.constant 128 : i32
    %3 = arith.muli %arg1, %c128_i32 : i32
    %4 = tpu.assume_multiple %3, 128 : i32
    %5 = arith.index_cast %4 : i32 to index
    %c0 = arith.constant 0 : index
    %6 = vector.load %arg3[%5, %c0] : memref<128x128xbf16, #tpu.memory_space<vmem>>, vector<128x128xbf16>
    %c0_1 = arith.constant 0 : index
    %c0_2 = arith.constant 0 : index
    %7 = vector.load %arg7[%c0_1, %c0_2] : memref<128x128xf32, #tpu.memory_space<vmem>>, vector<128x128xf32>
    %c0_3 = arith.constant 0 : index
    %c0_4 = arith.constant 0 : index
    %8 = vector.load %arg2[%c0_3, %c0_4] : memref<128x128xbf16, #tpu.memory_space<vmem>>, vector<128x128xbf16>
    %cst = arith.constant dense<0.000000e+00> : vector<128x128xf32>
    %9 = tpu.matmul %8, %6, %cst {dimension_numbers = #tpu.dot_dimension_numbers<[1], [0], [0], [1], [0, 0, 1, 1], [], []>} : vector<128x128xbf16>, vector<128x128xbf16>, vector<128x128xf32> -> vector<128x128xf32>
    %10 = arith.addf %7, %9 : vector<128x128xf32>
    %c0_5 = arith.constant 0 : index
    %c0_6 = arith.constant 0 : index
    %11 = vector.load %arg7[%c0_5, %c0_6] : memref<128x128xf32, #tpu.memory_space<vmem>>, vector<128x128xf32>
    tpu.vector_store %arg7[%c0_5, %c0_6], %10 {strides = array<i32>} : memref<128x128xf32, #tpu.memory_space<vmem>>, vector<128x128xf32>,
    %c0_i32_7 = arith.constant 0 : i32
    %12 = arith.cmpi eq, %arg1, %c0_i32_7 : i32
    %13 = arith.extui %12 : i1 to i32
    %c0_i32_8 = arith.constant 0 : i32
    %14 = arith.cmpi ne, %13, %c0_i32_8 : i32
    scf.if %14 {
      %c0_9 = arith.constant 0 : index
      %c0_10 = arith.constant 0 : index
      %15 = vector.load %arg7[%c0_9, %c0_10] : memref<128x128xf32, #tpu.memory_space<vmem>>, vector<128x128xf32>
      %c128_i32_11 = arith.constant 128 : i32
      %16 = arith.muli %arg0, %c128_i32_11 : i32
      %17 = tpu.assume_multiple %16, 128 : i32
      %18 = arith.index_cast %17 : i32 to index
      %c0_12 = arith.constant 0 : index
      %19 = vector.load %arg3[%18, %c0_12] : memref<128x128xbf16, #tpu.memory_space<vmem>>, vector<128x128xbf16>
      %20 = arith.extf %19 : vector<128x128xbf16> to vector<128x128xf32>
      %21 = arith.addf %15, %20 : vector<128x128xf32>
      %22 = arith.mulf %15, %20 : vector<128x128xf32>
      %23 = tpu.concatenate %21, %22 in 1 : vector<128x128xf32>, vector<128x128xf32> -> vector<128x256xf32>
      %c0_13 = arith.constant 0 : index
      %c0_14 = arith.constant 0 : index
      %24 = vector.load %arg4[%c0_13, %c0_14] : memref<256x128xf32, #tpu.memory_space<vmem>>, vector<256x128xf32>
      %cst_15 = arith.constant dense<0.000000e+00> : vector<128x128xf32>
      %25 = tpu.matmul %23, %24, %cst_15 {dimension_numbers = #tpu.dot_dimension_numbers<[1], [0], [0], [1], [0, 0, 1, 1], [], []>} : vector<128x256xf32>, vector<256x128xf32>, vector<128x128xf32> -> vector<128x128xf32>
      %c0_16 = arith.constant 0 : index
      %c0_17 = arith.constant 0 : index
      %26 = vector.load %arg5[%c0_16, %c0_17] : memref<1x128xf32, #tpu.memory_space<vmem>>, vector<1x128xf32>
      %27 = vector.broadcast %26 : vector<1x128xf32> to vector<128x128xf32>
      %28 = arith.addf %25, %27 : vector<128x128xf32>
      %c0_18 = arith.constant 0 : index
      %c0_19 = arith.constant 0 : index
      %29 = vector.load %arg6[%c0_18, %c0_19] : memref<128x128xf32, #tpu.memory_space<vmem>>, vector<128x128xf32>
      tpu.vector_store %arg6[%c0_18, %c0_19], %28 {strides = array<i32>} : memref<128x128xf32, #tpu.memory_space<vmem>>, vector<128x128xf32>,
    } else {
    }
    return
  }
  func.func @transform_0(%arg0: i32, %arg1: i32) -> (i32, i32) {
    %c0_i32 = arith.constant 0 : i32
    return %arg0, %arg1 : i32, i32
  }
  func.func @transform_1(%arg0: i32, %arg1: i32) -> (i32, i32) {
    %c0_i32 = arith.constant 0 : i32
    %c0_i32_0 = arith.constant 0 : i32
    %c0_i32_1 = arith.constant 0 : i32
    return %c0_i32, %c0_i32_0 : i32, i32
  }
  func.func @transform_2(%arg0: i32, %arg1: i32) -> (i32, i32) {
    %c0_i32 = arith.constant 0 : i32
    %c0_i32_0 = arith.constant 0 : i32
    %c0_i32_1 = arith.constant 0 : i32
    return %c0_i32, %c0_i32_0 : i32, i32
  }
  func.func @transform_3(%arg0: i32, %arg1: i32) -> (i32, i32) {
    %c0_i32 = arith.constant 0 : i32
    %c0_i32_0 = arith.constant 0 : i32
    %c0_i32_1 = arith.constant 0 : i32
    return %c0_i32, %c0_i32_0 : i32, i32
  }
  func.func @transform_4(%arg0: i32, %arg1: i32) -> (i32, i32) {
    %c0_i32 = arith.constant 0 : i32
    %c0_i32_0 = arith.constant 0 : i32
    return %arg0, %c0_i32 : i32, i32
  }
}

</mosaic_0001>

<llo_original>
// kernel: tpu_custom_call.1
$region0: #{tpu_custom_call.1}
  #allocation0 [shape = 'u32[]', space=smem, size = 0x4, offset = 0x4, fixed_abs, tag = 'smem constant byte address 0x4 - core index']
  #allocation1 [shape = 'u32[72,128]{1,0:T(1,128)}', space=vmem, size = 0x9000, scoped, tag = 'internal scratch']
  #allocation2 [shape = 'f32[128,128]{1,0:T(8,128)}', space=vmem, size = 0x10000, scoped, tag = 'scratch operand']
  %s0 = inlined_call_operand.hbm [shape: bf16[128,128], index: 0, kind: input, shape index: {}]
  %s1 = inlined_call_operand.hbm [shape: bf16[128,128], index: 1, kind: input, shape index: {}]
  %s2 = inlined_call_operand.hbm [shape: f32[256,128], index: 2, kind: input, shape index: {}]
  %s3 = inlined_call_operand.vmem [shape: f32[1,128], index: 3, kind: input, shape index: {}]
  %s4 = inlined_call_operand.hbm [shape: f32[128,128], index: 4, kind: output, shape index: {}]
  %s5 = sld [smem:[#allocation0]]
  $region46: #{tpu_custom_call.1} parent=0
    _
  %s7 = ssub.s32 1, %s5
  %s8 = scalar_select 0, %s7, %s5
  $region1: #{tpu_custom_call.1} parent=0
    #allocation3 [shape = 'u8[32768]{0}', space=vmem, size = 0x8000, scoped, tag = 'input window, operand 0, single buffered']
    #allocation4 [shape = 's32[1]{0}', space=sflag, size = 0x4, scoped, tag = 'scoped memory for tpu_custom_call.1']
    #allocation5 [shape = 's32[1]{0}', space=sflag, size = 0x4, scoped, tag = 'scoped memory for tpu_custom_call.1']
    #allocation6 [shape = 'u8[32768]{0}', space=vmem, size = 0x8000, scoped, tag = 'input window, operand 1, single buffered']
    #allocation7 [shape = 's32[1]{0}', space=sflag, size = 0x4, scoped, tag = 'scoped memory for tpu_custom_call.1']
    #allocation8 [shape = 'u8[131072]{0}', space=vmem, size = 0x20000, scoped, tag = 'input window, operand 2, single buffered']
    #allocation9 [shape = 'u8[65536]{0}', space=vmem, size = 0x10000, scoped, tag = 'output window, operand 0, single buffered']
    %9 = vsyncpa [#allocation4], 0
    %10 = vsyncpa [#allocation7], 0
    %11 = vsyncpa [#allocation5], 0
    // Predicated region
    $region2: #{tpu_custom_call.1} parent=1 // pred_check
      _
    $region3: #{tpu_custom_call.1} parent=1 // pred_check_branch
      %13 = sbr.rel (0) target = $region5
    $region4: #{tpu_custom_call.1} parent=1 // pred_region
      %15 = vsyncadd [#allocation4], 0
      %s16 = sshll.u32 %s0, 4
      %s17 = int_to_ptr.hbm [resolvable:$true] %s16
      %s18 = sshll.u32 [#allocation3], 4
      %s19 = int_to_ptr.vmem [resolvable:$true] %s18
      %24 = dma.hbm_to_vmem [thread:$0]  %s17, 1024, %s19, [#allocation4], 64, 64, 4
    $region5: #{tpu_custom_call.1} parent=1 // pred_fallthru
      _
    // Predicated region
    $region6: #{tpu_custom_call.1} parent=1 // pred_check
      _
    $region7: #{tpu_custom_call.1} parent=1 // pred_check_branch
      %26 = sbr.rel (0) target = $region9
    $region8: #{tpu_custom_call.1} parent=1 // pred_region
      %28 = vsyncadd [#allocation7], 0
      %s29 = sshll.u32 %s1, 4
      %s30 = int_to_ptr.hbm [resolvable:$true] %s29
      %s31 = sshll.u32 [#allocation6], 4
      %s32 = int_to_ptr.vmem [resolvable:$true] %s31
      %37 = dma.hbm_to_vmem [thread:$0]  %s30, 1024, %s32, [#allocation7], 64, 64, 4
    $region9: #{tpu_custom_call.1} parent=1 // pred_fallthru
      _
    // Predicated region
    $region10: #{tpu_custom_call.1} parent=1 // pred_check
      _
    $region11: #{tpu_custom_call.1} parent=1 // pred_check_branch
      %39 = sbr.rel (0) target = $region13
    $region12: #{tpu_custom_call.1} parent=1 // pred_region
      %41 = vsyncadd [#allocation7], 0
      %s42 = sshll.u32 %s2, 4
      %s43 = int_to_ptr.hbm [resolvable:$true] %s42
      %s44 = sshll.u32 [#allocation8], 4
      %s45 = int_to_ptr.vmem [resolvable:$true] %s44
      %50 = dma.hbm_to_vmem [thread:$0]  %s43, 4096, %s45, [#allocation7], 128, 128, 8
    $region13: #{tpu_custom_call.1} parent=1 // pred_fallthru
      _
    // Predicated region
    $region14: #{tpu_custom_call.1} parent=1 // pred_check
      _
    $region15: #{tpu_custom_call.1} parent=1 // pred_check_branch
      %52 = sbr.rel (0) target = $region17
    $region16: #{tpu_custom_call.1} parent=1 // pred_region
      _
    $region17: #{tpu_custom_call.1} parent=1 // pred_fallthru
      _
    // Predicated region
    $region18: #{tpu_custom_call.1} parent=1 // pred_check
      _
    $region19: #{tpu_custom_call.1} parent=1 // pred_check_branch
      %54 = sbr.rel (0) target = $region21
    $region20: #{tpu_custom_call.1} parent=1 // pred_region
      %56 = dma.done [#allocation4], 1024
    $region21: #{tpu_custom_call.1} parent=1 // pred_fallthru
      _
    // Predicated region
    $region22: #{tpu_custom_call.1} parent=1 // pred_check
      _
    $region23: #{tpu_custom_call.1} parent=1 // pred_check_branch
      %58 = sbr.rel (0) target = $region25
    $region24: #{tpu_custom_call.1} parent=1 // pred_region
      %60 = dma.done [#allocation7], 1024
    $region25: #{tpu_custom_call.1} parent=1 // pred_fallthru
      _
    // Predicated region
    $region26: #{tpu_custom_call.1} parent=1 // pred_check
      _
    $region27: #{tpu_custom_call.1} parent=1 // pred_check_branch
      %62 = sbr.rel (0) target = $region29
    $region28: #{tpu_custom_call.1} parent=1 // pred_region
      %64 = dma.done [#allocation7], 4096
    $region29: #{tpu_custom_call.1} parent=1 // pred_fallthru
      _
    %p65 = scmp.eq.s32.totalorder 0, 0
    // Predicated region
    $region30: #{tpu_custom_call.1} parent=1 // pred_check
      %p66 = pneg %p65
    $region31: #{tpu_custom_call.1} parent=1 // pred_check_branch
      %68 = sbr.rel (%p66) target = $region33
    $region32: #{tpu_custom_call.1} parent=1 // pred_region
      %69 = vst [vmem:[#allocation2] sm:$0xff] 0.0
      %70 = vst [vmem:[#allocation2 + $0x8] sm:$0xff] 0.0
      %71 = vst [vmem:[#allocation2 + $0x10] sm:$0xff] 0.0
      %72 = vst [vmem:[#allocation2 + $0x18] sm:$0xff] 0.0
      %73 = vst [vmem:[#allocation2 + $0x20] sm:$0xff] 0.0
      %74 = vst [vmem:[#allocation2 + $0x28] sm:$0xff] 0.0
      %75 = vst [vmem:[#allocation2 + $0x30] sm:$0xff] 0.0
      %76 = vst [vmem:[#allocation2 + $0x38] sm:$0xff] 0.0
      %77 = vst [vmem:[#allocation2 + $0x40] sm:$0xff] 0.0
      %78 = vst [vmem:[#allocation2 + $0x48] sm:$0xff] 0.0
      %79 = vst [vmem:[#allocation2 + $0x50] sm:$0xff] 0.0
      %80 = vst [vmem:[#allocation2 + $0x58] sm:$0xff] 0.0
      %81 = vst [vmem:[#allocation2 + $0x60] sm:$0xff] 0.0
      %82 = vst [vmem:[#allocation2 + $0x68] sm:$0xff] 0.0
      %83 = vst [vmem:[#allocation2 + $0x70] sm:$0xff] 0.0
      %84 = vst [vmem:[#allocation2 + $0x78] sm:$0xff] 0.0
    $region33: #{tpu_custom_call.1} parent=1 // pred_fallthru
      _
    %s85 = smul.u32 0, 128
    %s86 = sshra.s32 %s85, 3
    %s87 = sand.u32 %s85, 7
    %s88 = smul.addr %s86, 4
    %s89 = scalar_lea.vmem [#allocation6], %s88
    %v90 = vld [vmem:[%s89] sm:$0xf]
    %v91 = vld [vmem:[%s89 + $0x4] sm:$0xf]
    %v92 = vld [vmem:[%s89 + $0x8] sm:$0xf]
    %v93 = vld [vmem:[%s89 + $0xc] sm:$0xf]
    %v94 = vld [vmem:[%s89 + $0x10] sm:$0xf]
    %v95 = vld [vmem:[%s89 + $0x14] sm:$0xf]
    %v96 = vld [vmem:[%s89 + $0x18] sm:$0xf]
    %v97 = vld [vmem:[%s89 + $0x1c] sm:$0xf]
    %v98 = vld [vmem:[%s89 + $0x20] sm:$0xf]
    %v99 = vld [vmem:[%s89 + $0x24] sm:$0xf]
    %v100 = vld [vmem:[%s89 + $0x28] sm:$0xf]
    %v101 = vld [vmem:[%s89 + $0x2c] sm:$0xf]
    %v102 = vld [vmem:[%s89 + $0x30] sm:$0xf]
    %v103 = vld [vmem:[%s89 + $0x34] sm:$0xf]
    %v104 = vld [vmem:[%s89 + $0x38] sm:$0xf]
    %v105 = vld [vmem:[%s89 + $0x3c] sm:$0xf]
    %v106 = vld [vmem:[#allocation2] sm:$0xff]
    %v107 = vld [vmem:[#allocation2 + $0x8] sm:$0xff]
    %v108 = vld [vmem:[#allocation2 + $0x10] sm:$0xff]
    %v109 = vld [vmem:[#allocation2 + $0x18] sm:$0xff]
    %v110 = vld [vmem:[#allocation2 + $0x20] sm:$0xff]
    %v111 = vld [vmem:[#allocation2 + $0x28] sm:$0xff]
    %v112 = vld [vmem:[#allocation2 + $0x30] sm:$0xff]
    %v113 = vld [vmem:[#allocation2 + $0x38] sm:$0xff]
    %v114 = vld [vmem:[#allocation2 + $0x40] sm:$0xff]
    %v115 = vld [vmem:[#allocation2 + $0x48] sm:$0xff]
    %v116 = vld [vmem:[#allocation2 + $0x50] sm:$0xff]
    %v117 = vld [vmem:[#allocation2 + $0x58] sm:$0xff]
    %v118 = vld [vmem:[#allocation2 + $0x60] sm:$0xff]
    %v119 = vld [vmem:[#allocation2 + $0x68] sm:$0xff]
    %v120 = vld [vmem:[#allocation2 + $0x70] sm:$0xff]
    %v121 = vld [vmem:[#allocation2 + $0x78] sm:$0xff]
    %v122 = vld [vmem:[#allocation3] sm:$0xf]
    %v123 = vld [vmem:[#allocation3 + $0x4] sm:$0xf]
    %v124 = vld [vmem:[#allocation3 + $0x8] sm:$0xf]
    %v125 = vld [vmem:[#allocation3 + $0xc] sm:$0xf]
    %v126 = vld [vmem:[#allocation3 + $0x10] sm:$0xf]
    %v127 = vld [vmem:[#allocation3 + $0x14] sm:$0xf]
    %v128 = vld [vmem:[#allocation3 + $0x18] sm:$0xf]
    %v129 = vld [vmem:[#allocation3 + $0x1c] sm:$0xf]
    %v130 = vld [vmem:[#allocation3 + $0x20] sm:$0xf]
    %v131 = vld [vmem:[#allocation3 + $0x24] sm:$0xf]
    %v132 = vld [vmem:[#allocation3 + $0x28] sm:$0xf]
    %v133 = vld [vmem:[#allocation3 + $0x2c] sm:$0xf]
    %v134 = vld [vmem:[#allocation3 + $0x30] sm:$0xf]
    %v135 = vld [vmem:[#allocation3 + $0x34] sm:$0xf]
    %v136 = vld [vmem:[#allocation3 + $0x38] sm:$0xf]
    %v137 = vld [vmem:[#allocation3 + $0x3c] sm:$0xf]
    %v154 = vunpack.c.l.b16 %v122
    %v155 = vunpack.c.l.b16 %v123
    %v156 = vunpack.c.l.b16 %v124
    %v157 = vunpack.c.l.b16 %v125
    %v158 = vunpack.c.l.b16 %v126
    %v159 = vunpack.c.l.b16 %v127
    %v160 = vunpack.c.l.b16 %v128
    %v161 = vunpack.c.l.b16 %v129
    %v162 = vunpack.c.l.b16 %v130
    %v163 = vunpack.c.l.b16 %v131
    %v164 = vunpack.c.l.b16 %v132
    %v165 = vunpack.c.l.b16 %v133
    %v166 = vunpack.c.l.b16 %v134
    %v167 = vunpack.c.l.b16 %v135
    %v168 = vunpack.c.l.b16 %v136
    %v169 = vunpack.c.l.b16 %v137
    %v170 = vpack.c.b16 %v155, %v154
    %v171 = vpack.c.b16 %v157, %v156
    %v172 = vpack.c.b16 %v159, %v158
    %v173 = vpack.c.b16 %v161, %v160
    %v174 = vpack.c.b16 %v163, %v162
    %v175 = vpack.c.b16 %v165, %v164
    %v176 = vpack.c.b16 %v167, %v166
    %v177 = vpack.c.b16 %v169, %v168
    %v202 = vunpack.c.l.b16 %v90
    %v203 = vunpack.c.l.b16 %v91
    %v204 = vunpack.c.l.b16 %v92
    %v205 = vunpack.c.l.b16 %v93
    %v206 = vunpack.c.l.b16 %v94
    %v207 = vunpack.c.l.b16 %v95
    %v208 = vunpack.c.l.b16 %v96
    %v209 = vunpack.c.l.b16 %v97
    %v210 = vunpack.c.l.b16 %v98
    %v211 = vunpack.c.l.b16 %v99
    %v212 = vunpack.c.l.b16 %v100
    %v213 = vunpack.c.l.b16 %v101
    %v214 = vunpack.c.l.b16 %v102
    %v215 = vunpack.c.l.b16 %v103
    %v216 = vunpack.c.l.b16 %v104
    %v217 = vunpack.c.l.b16 %v105
    %v218 = vpack.c.b16 %v203, %v202
    %v219 = vpack.c.b16 %v205, %v204
    %v220 = vpack.c.b16 %v207, %v206
    %v221 = vpack.c.b16 %v209, %v208
    %v222 = vpack.c.b16 %v211, %v210
    %v223 = vpack.c.b16 %v213, %v212
    %v224 = vpack.c.b16 %v215, %v214
    %v225 = vpack.c.b16 %v217, %v216
    %234 = vmatpush.bf16.msra.mxu0 %v225
    %235 = vmatpush.bf16.msra.mxu0 %v224
    %236 = vmatpush.bf16.msra.mxu0 %v223
    %237 = vmatpush.bf16.msra.mxu0 %v222
    %238 = vmatpush.bf16.msra.mxu0 %v221
    %239 = vmatpush.bf16.msra.mxu0 %v220
    %240 = vmatpush.bf16.msra.mxu0 %v219
    %241 = vmatpush.bf16.msra.mxu0 %v218
    %242 = vmatmul.bf16.gmra.mxu0 %v170
    %v243 = vpop.f32.mrf.mxu0
    %v244 = vadd.f32 0.0, %v243
    %v245 = vpop.f32.mrf.mxu0
    %v246 = vadd.f32 0.0, %v245
    %247 = vmatmul.bf16.gmra.mxu0 %v171
    %v248 = vpop.f32.mrf.mxu0
    %v249 = vadd.f32 0.0, %v248
    %v250 = vpop.f32.mrf.mxu0
    %v251 = vadd.f32 0.0, %v250
    %252 = vmatmul.bf16.gmra.mxu0 %v172
    %v253 = vpop.f32.mrf.mxu0
    %v254 = vadd.f32 0.0, %v253
    %v255 = vpop.f32.mrf.mxu0
    %v256 = vadd.f32 0.0, %v255
    %257 = vmatmul.bf16.gmra.mxu0 %v173
    %v258 = vpop.f32.mrf.mxu0
    %v259 = vadd.f32 0.0, %v258
    %v260 = vpop.f32.mrf.mxu0
    %v261 = vadd.f32 0.0, %v260
    %262 = vmatmul.bf16.gmra.mxu0 %v174
    %v263 = vpop.f32.mrf.mxu0
    %v264 = vadd.f32 0.0, %v263
    %v265 = vpop.f32.mrf.mxu0
    %v266 = vadd.f32 0.0, %v265
    %267 = vmatmul.bf16.gmra.mxu0 %v175
    %v268 = vpop.f32.mrf.mxu0
    %v269 = vadd.f32 0.0, %v268
    %v270 = vpop.f32.mrf.mxu0
    %v271 = vadd.f32 0.0, %v270
    %272 = vmatmul.bf16.gmra.mxu0 %v176
    %v273 = vpop.f32.mrf.mxu0
    %v274 = vadd.f32 0.0, %v273
    %v275 = vpop.f32.mrf.mxu0
    %v276 = vadd.f32 0.0, %v275
    %277 = vmatmul.bf16.gmra.mxu0 %v177
    %v278 = vpop.f32.mrf.mxu0
    %v279 = vadd.f32 0.0, %v278
    %v280 = vpop.f32.mrf.mxu0
    %v281 = vadd.f32 0.0, %v280
    %282 = vdwg.mxu0
    %v283 = vadd.f32 %v106, %v244
    %v284 = vadd.f32 %v107, %v246
    %v285 = vadd.f32 %v108, %v249
    %v286 = vadd.f32 %v109, %v251
    %v287 = vadd.f32 %v110, %v254
    %v288 = vadd.f32 %v111, %v256
    %v289 = vadd.f32 %v112, %v259
    %v290 = vadd.f32 %v113, %v261
    %v291 = vadd.f32 %v114, %v264
    %v292 = vadd.f32 %v115, %v266
    %v293 = vadd.f32 %v116, %v269
    %v294 = vadd.f32 %v117, %v271
    %v295 = vadd.f32 %v118, %v274
    %v296 = vadd.f32 %v119, %v276
    %v297 = vadd.f32 %v120, %v279
    %v298 = vadd.f32 %v121, %v281
    %299 = vst [vmem:[#allocation2] sm:$0xff] %v283
    %300 = vst [vmem:[#allocation2 + $0x8] sm:$0xff] %v284
    %301 = vst [vmem:[#allocation2 + $0x10] sm:$0xff] %v285
    %302 = vst [vmem:[#allocation2 + $0x18] sm:$0xff] %v286
    %303 = vst [vmem:[#allocation2 + $0x20] sm:$0xff] %v287
    %304 = vst [vmem:[#allocation2 + $0x28] sm:$0xff] %v288
    %305 = vst [vmem:[#allocation2 + $0x30] sm:$0xff] %v289
    %306 = vst [vmem:[#allocation2 + $0x38] sm:$0xff] %v290
    %307 = vst [vmem:[#allocation2 + $0x40] sm:$0xff] %v291
    %308 = vst [vmem:[#allocation2 + $0x48] sm:$0xff] %v292
    %309 = vst [vmem:[#allocation2 + $0x50] sm:$0xff] %v293
    %310 = vst [vmem:[#allocation2 + $0x58] sm:$0xff] %v294
    %311 = vst [vmem:[#allocation2 + $0x60] sm:$0xff] %v295
    %312 = vst [vmem:[#allocation2 + $0x68] sm:$0xff] %v296
    %313 = vst [vmem:[#allocation2 + $0x70] sm:$0xff] %v297
    %314 = vst [vmem:[#allocation2 + $0x78] sm:$0xff] %v298
    // Predicated region
    $region34: #{tpu_custom_call.1} parent=1 // pred_check
      %p315 = pneg %p65
    $region35: #{tpu_custom_call.1} parent=1 // pred_check_branch
      %317 = sbr.rel (%p315) target = $region37
    $region36: #{tpu_custom_call.1} parent=1 // pred_region
      %v318 = vld [vmem:[#allocation2] sm:$0xff]
      %v319 = vld [vmem:[#allocation2 + $0x8] sm:$0xff]
      %v320 = vld [vmem:[#allocation2 + $0x10] sm:$0xff]
      %v321 = vld [vmem:[#allocation2 + $0x18] sm:$0xff]
      %v322 = vld [vmem:[#allocation2 + $0x20] sm:$0xff]
      %v323 = vld [vmem:[#allocation2 + $0x28] sm:$0xff]
      %v324 = vld [vmem:[#allocation2 + $0x30] sm:$0xff]
      %v325 = vld [vmem:[#allocation2 + $0x38] sm:$0xff]
      %v326 = vld [vmem:[#allocation2 + $0x40] sm:$0xff]
      %v327 = vld [vmem:[#allocation2 + $0x48] sm:$0xff]
      %v328 = vld [vmem:[#allocation2 + $0x50] sm:$0xff]
      %v329 = vld [vmem:[#allocation2 + $0x58] sm:$0xff]
      %v330 = vld [vmem:[#allocation2 + $0x60] sm:$0xff]
      %v331 = vld [vmem:[#allocation2 + $0x68] sm:$0xff]
      %v332 = vld [vmem:[#allocation2 + $0x70] sm:$0xff]
      %v333 = vld [vmem:[#allocation2 + $0x78] sm:$0xff]
      %s334 = smul.u32 0, 128
      %s335 = sshra.s32 %s334, 3
      %s336 = sand.u32 %s334, 7
      %s337 = smul.addr %s335, 4
      %s338 = scalar_lea.vmem [#allocation6], %s337
      %v339 = vld [vmem:[%s338] sm:$0xf]
      %v340 = vld [vmem:[%s338 + $0x4] sm:$0xf]
      %v341 = vld [vmem:[%s338 + $0x8] sm:$0xf]
      %v342 = vld [vmem:[%s338 + $0xc] sm:$0xf]
      %v343 = vld [vmem:[%s338 + $0x10] sm:$0xf]
      %v344 = vld [vmem:[%s338 + $0x14] sm:$0xf]
      %v345 = vld [vmem:[%s338 + $0x18] sm:$0xf]
      %v346 = vld [vmem:[%s338 + $0x1c] sm:$0xf]
      %v347 = vld [vmem:[%s338 + $0x20] sm:$0xf]
      %v348 = vld [vmem:[%s338 + $0x24] sm:$0xf]
      %v349 = vld [vmem:[%s338 + $0x28] sm:$0xf]
      %v350 = vld [vmem:[%s338 + $0x2c] sm:$0xf]
      %v351 = vld [vmem:[%s338 + $0x30] sm:$0xf]
      %v352 = vld [vmem:[%s338 + $0x34] sm:$0xf]
      %v353 = vld [vmem:[%s338 + $0x38] sm:$0xf]
      %v354 = vld [vmem:[%s338 + $0x3c] sm:$0xf]
      %v355 = vunpack.c.l.bf16 %v339
      %v356 = vunpack.c.l.bf16 %v340
      %v357 = vunpack.c.l.bf16 %v341
      %v358 = vunpack.c.l.bf16 %v342
      %v359 = vunpack.c.l.bf16 %v343
      %v360 = vunpack.c.l.bf16 %v344
      %v361 = vunpack.c.l.bf16 %v345
      %v362 = vunpack.c.l.bf16 %v346
      %v363 = vunpack.c.l.bf16 %v347
      %v364 = vunpack.c.l.bf16 %v348
      %v365 = vunpack.c.l.bf16 %v349
      %v366 = vunpack.c.l.bf16 %v350
      %v367 = vunpack.c.l.bf16 %v351
      %v368 = vunpack.c.l.bf16 %v352
      %v369 = vunpack.c.l.bf16 %v353
      %v370 = vunpack.c.l.bf16 %v354
      %v371 = vadd.f32 %v318, %v355
      %v372 = vadd.f32 %v319, %v356
      %v373 = vadd.f32 %v320, %v357
      %v374 = vadd.f32 %v321, %v358
      %v375 = vadd.f32 %v322, %v359
      %v376 = vadd.f32 %v323, %v360
      %v377 = vadd.f32 %v324, %v361
      %v378 = vadd.f32 %v325, %v362
      %v379 = vadd.f32 %v326, %v363
      %v380 = vadd.f32 %v327, %v364
      %v381 = vadd.f32 %v328, %v365
      %v382 = vadd.f32 %v329, %v366
      %v383 = vadd.f32 %v330, %v367
      %v384 = vadd.f32 %v331, %v368
      %v385 = vadd.f32 %v332, %v369
      %v386 = vadd.f32 %v333, %v370
      %v387 = vmul.f32 %v318, %v355
      %v388 = vmul.f32 %v319, %v356
      %v389 = vmul.f32 %v320, %v357
      %v390 = vmul.f32 %v321, %v358
      %v391 = vmul.f32 %v322, %v359
      %v392 = vmul.f32 %v323, %v360
      %v393 = vmul.f32 %v324, %v361
      %v394 = vmul.f32 %v325, %v362
      %v395 = vmul.f32 %v326, %v363
      %v396 = vmul.f32 %v327, %v364
      %v397 = vmul.f32 %v328, %v365
      %v398 = vmul.f32 %v329, %v366
      %v399 = vmul.f32 %v330, %v367
      %v400 = vmul.f32 %v331, %v368
      %v401 = vmul.f32 %v332, %v369
      %v402 = vmul.f32 %v333, %v370
      %v403 = vld [vmem:[#allocation8] sm:$0xff]
      %v404 = vld [vmem:[#allocation8 + $0x8] sm:$0xff]
      %v405 = vld [vmem:[#allocation8 + $0x10] sm:$0xff]
      %v406 = vld [vmem:[#allocation8 + $0x18] sm:$0xff]
      %v407 = vld [vmem:[#allocation8 + $0x20] sm:$0xff]
      %v408 = vld [vmem:[#allocation8 + $0x28] sm:$0xff]
      %v409 = vld [vmem:[#allocation8 + $0x30] sm:$0xff]
      %v410 = vld [vmem:[#allocation8 + $0x38] sm:$0xff]
      %v411 = vld [vmem:[#allocation8 + $0x40] sm:$0xff]
      %v412 = vld [vmem:[#allocation8 + $0x48] sm:$0xff]
      %v413 = vld [vmem:[#allocation8 + $0x50] sm:$0xff]
      %v414 = vld [vmem:[#allocation8 + $0x58] sm:$0xff]
      %v415 = vld [vmem:[#allocation8 + $0x60] sm:$0xff]
      %v416 = vld [vmem:[#allocation8 + $0x68] sm:$0xff]
      %v417 = vld [vmem:[#allocation8 + $0x70] sm:$0xff]
      %v418 = vld [vmem:[#allocation8 + $0x78] sm:$0xff]
      %v419 = vld [vmem:[#allocation8 + $0x80] sm:$0xff]
      %v420 = vld [vmem:[#allocation8 + $0x88] sm:$0xff]
      %v421 = vld [vmem:[#allocation8 + $0x90] sm:$0xff]
      %v422 = vld [vmem:[#allocation8 + $0x98] sm:$0xff]
      %v423 = vld [vmem:[#allocation8 + $0xa0] sm:$0xff]
      %v424 = vld [vmem:[#allocation8 + $0xa8] sm:$0xff]
      %v425 = vld [vmem:[#allocation8 + $0xb0] sm:$0xff]
      %v426 = vld [vmem:[#allocation8 + $0xb8] sm:$0xff]
      %v427 = vld [vmem:[#allocation8 + $0xc0] sm:$0xff]
      %v428 = vld [vmem:[#allocation8 + $0xc8] sm:$0xff]
      %v429 = vld [vmem:[#allocation8 + $0xd0] sm:$0xff]
      %v430 = vld [vmem:[#allocation8 + $0xd8] sm:$0xff]
      %v431 = vld [vmem:[#allocation8 + $0xe0] sm:$0xff]
      %v432 = vld [vmem:[#allocation8 + $0xe8] sm:$0xff]
      %v433 = vld [vmem:[#allocation8 + $0xf0] sm:$0xff]
      %v434 = vld [vmem:[#allocation8 + $0xf8] sm:$0xff]
      %v435 = vld [vmem:[%s3] sm:$0x1]
      %v437 = vperm.slane %v435, 0
      %439 = vmatpush.msra.mxu0 %v418
      %440 = vmatpush.msra.mxu0 %v417
      %441 = vmatpush.msra.mxu0 %v416
      %442 = vmatpush.msra.mxu0 %v415
      %443 = vmatpush.msra.mxu0 %v414
      %444 = vmatpush.msra.mxu0 %v413
      %445 = vmatpush.msra.mxu0 %v412
      %446 = vmatpush.msra.mxu0 %v411
      %447 = vmatpush.msra.mxu0 %v410
      %448 = vmatpush.msra.mxu0 %v409
      %449 = vmatpush.msra.mxu0 %v408
      %450 = vmatpush.msra.mxu0 %v407
      %451 = vmatpush.msra.mxu0 %v406
      %452 = vmatpush.msra.mxu0 %v405
      %453 = vmatpush.msra.mxu0 %v404
      %454 = vmatpush.msra.mxu0 %v403
      %455 = vmatmul.f32.gmra.mxu0 %v371
      %v456 = vpop.f32.mrf.mxu0
      %v457 = vadd.f32 %v437, %v456
      %458 = vmatmul.f32.gmra.mxu0 %v372
      %v459 = vpop.f32.mrf.mxu0
      %v460 = vadd.f32 %v437, %v459
      %461 = vmatmul.f32.gmra.mxu0 %v373
      %v462 = vpop.f32.mrf.mxu0
      %v463 = vadd.f32 %v437, %v462
      %464 = vmatmul.f32.gmra.mxu0 %v374
      %v465 = vpop.f32.mrf.mxu0
      %v466 = vadd.f32 %v437, %v465
      %467 = vmatmul.f32.gmra.mxu0 %v375
      %v468 = vpop.f32.mrf.mxu0
      %v469 = vadd.f32 %v437, %v468
      %470 = vmatmul.f32.gmra.mxu0 %v376
      %v471 = vpop.f32.mrf.mxu0
      %v472 = vadd.f32 %v437, %v471
      %473 = vmatmul.f32.gmra.mxu0 %v377
      %v474 = vpop.f32.mrf.mxu0
      %v475 = vadd.f32 %v437, %v474
      %476 = vmatmul.f32.gmra.mxu0 %v378
      %v477 = vpop.f32.mrf.mxu0
      %v478 = vadd.f32 %v437, %v477
      %479 = vmatmul.f32.gmra.mxu0 %v379
      %v480 = vpop.f32.mrf.mxu0
      %v481 = vadd.f32 %v437, %v480
      %482 = vmatmul.f32.gmra.mxu0 %v380
      %v483 = vpop.f32.mrf.mxu0
      %v484 = vadd.f32 %v437, %v483
      %485 = vmatmul.f32.gmra.mxu0 %v381
      %v486 = vpop.f32.mrf.mxu0
      %v487 = vadd.f32 %v437, %v486
      %488 = vmatmul.f32.gmra.mxu0 %v382
      %v489 = vpop.f32.mrf.mxu0
      %v490 = vadd.f32 %v437, %v489
      %491 = vmatmul.f32.gmra.mxu0 %v383
      %v492 = vpop.f32.mrf.mxu0
      %v493 = vadd.f32 %v437, %v492
      %494 = vmatmul.f32.gmra.mxu0 %v384
      %v495 = vpop.f32.mrf.mxu0
      %v496 = vadd.f32 %v437, %v495
      %497 = vmatmul.f32.gmra.mxu0 %v385
      %v498 = vpop.f32.mrf.mxu0
      %v499 = vadd.f32 %v437, %v498
      %500 = vmatmul.f32.gmra.mxu0 %v386
      %v501 = vpop.f32.mrf.mxu0
      %v502 = vadd.f32 %v437, %v501
      %503 = vdwg.mxu0
      %504 = vmatpush.msra.mxu0 %v434
      %505 = vmatpush.msra.mxu0 %v433
      %506 = vmatpush.msra.mxu0 %v432
      %507 = vmatpush.msra.mxu0 %v431
      %508 = vmatpush.msra.mxu0 %v430
      %509 = vmatpush.msra.mxu0 %v429
      %510 = vmatpush.msra.mxu0 %v428
      %511 = vmatpush.msra.mxu0 %v427
      %512 = vmatpush.msra.mxu0 %v426
      %513 = vmatpush.msra.mxu0 %v425
      %514 = vmatpush.msra.mxu0 %v424
      %515 = vmatpush.msra.mxu0 %v423
      %516 = vmatpush.msra.mxu0 %v422
      %517 = vmatpush.msra.mxu0 %v421
      %518 = vmatpush.msra.mxu0 %v420
      %519 = vmatpush.msra.mxu0 %v419
      %520 = vmatmul.f32.gmra.mxu0 %v387
      %v521 = vpop.f32.mrf.mxu0
      %v522 = vadd.f32 %v457, %v521
      %523 = vmatmul.f32.gmra.mxu0 %v388
      %v524 = vpop.f32.mrf.mxu0
      %v525 = vadd.f32 %v460, %v524
      %526 = vmatmul.f32.gmra.mxu0 %v389
      %v527 = vpop.f32.mrf.mxu0
      %v528 = vadd.f32 %v463, %v527
      %529 = vmatmul.f32.gmra.mxu0 %v390
      %v530 = vpop.f32.mrf.mxu0
      %v531 = vadd.f32 %v466, %v530
      %532 = vmatmul.f32.gmra.mxu0 %v391
      %v533 = vpop.f32.mrf.mxu0
      %v534 = vadd.f32 %v469, %v533
      %535 = vmatmul.f32.gmra.mxu0 %v392
      %v536 = vpop.f32.mrf.mxu0
      %v537 = vadd.f32 %v472, %v536
      %538 = vmatmul.f32.gmra.mxu0 %v393
      %v539 = vpop.f32.mrf.mxu0
      %v540 = vadd.f32 %v475, %v539
      %541 = vmatmul.f32.gmra.mxu0 %v394
      %v542 = vpop.f32.mrf.mxu0
      %v543 = vadd.f32 %v478, %v542
      %544 = vmatmul.f32.gmra.mxu0 %v395
      %v545 = vpop.f32.mrf.mxu0
      %v546 = vadd.f32 %v481, %v545
      %547 = vmatmul.f32.gmra.mxu0 %v396
      %v548 = vpop.f32.mrf.mxu0
      %v549 = vadd.f32 %v484, %v548
      %550 = vmatmul.f32.gmra.mxu0 %v397
      %v551 = vpop.f32.mrf.mxu0
      %v552 = vadd.f32 %v487, %v551
      %553 = vmatmul.f32.gmra.mxu0 %v398
      %v554 = vpop.f32.mrf.mxu0
      %v555 = vadd.f32 %v490, %v554
      %556 = vmatmul.f32.gmra.mxu0 %v399
      %v557 = vpop.f32.mrf.mxu0
      %v558 = vadd.f32 %v493, %v557
      %559 = vmatmul.f32.gmra.mxu0 %v400
      %v560 = vpop.f32.mrf.mxu0
      %v561 = vadd.f32 %v496, %v560
      %562 = vmatmul.f32.gmra.mxu0 %v401
      %v563 = vpop.f32.mrf.mxu0
      %v564 = vadd.f32 %v499, %v563
      %565 = vmatmul.f32.gmra.mxu0 %v402
      %v566 = vpop.f32.mrf.mxu0
      %v567 = vadd.f32 %v502, %v566
      %568 = vdwg.mxu0
      %569 = vst [vmem:[#allocation9] sm:$0xff] %v522
      %570 = vst [vmem:[#allocation9 + $0x8] sm:$0xff] %v525
      %571 = vst [vmem:[#allocation9 + $0x10] sm:$0xff] %v528
      %572 = vst [vmem:[#allocation9 + $0x18] sm:$0xff] %v531
      %573 = vst [vmem:[#allocation9 + $0x20] sm:$0xff] %v534
      %574 = vst [vmem:[#allocation9 + $0x28] sm:$0xff] %v537
      %575 = vst [vmem:[#allocation9 + $0x30] sm:$0xff] %v540
      %576 = vst [vmem:[#allocation9 + $0x38] sm:$0xff] %v543
      %577 = vst [vmem:[#allocation9 + $0x40] sm:$0xff] %v546
      %578 = vst [vmem:[#allocation9 + $0x48] sm:$0xff] %v549
      %579 = vst [vmem:[#allocation9 + $0x50] sm:$0xff] %v552
      %580 = vst [vmem:[#allocation9 + $0x58] sm:$0xff] %v555
      %581 = vst [vmem:[#allocation9 + $0x60] sm:$0xff] %v558
      %582 = vst [vmem:[#allocation9 + $0x68] sm:$0xff] %v561
      %583 = vst [vmem:[#allocation9 + $0x70] sm:$0xff] %v564
      %584 = vst [vmem:[#allocation9 + $0x78] sm:$0xff] %v567
    $region37: #{tpu_custom_call.1} parent=1 // pred_fallthru
      _
    // Predicated region
    $region38: #{tpu_custom_call.1} parent=1 // pred_check
      _
    $region39: #{tpu_custom_call.1} parent=1 // pred_check_branch
      %586 = sbr.rel (0) target = $region41
    $region40: #{tpu_custom_call.1} parent=1 // pred_region
      %588 = vsyncadd [#allocation5], 0
      %s589 = sshll.u32 [#allocation9], 4
      %s590 = int_to_ptr.vmem [resolvable:$true] %s589
      %s591 = sshll.u32 %s4, 4
      %s592 = int_to_ptr.hbm [resolvable:$true] %s591
      %597 = dma.vmem_to_hbm [thread:$0]  %s590, 2048, %s592, [#allocation5], 128, 128, 8
    $region41: #{tpu_custom_call.1} parent=1 // pred_fallthru
      _
    // Predicated region
    $region42: #{tpu_custom_call.1} parent=1 // pred_check
      _
    $region43: #{tpu_custom_call.1} parent=1 // pred_check_branch
      %599 = sbr.rel (0) target = $region45
    $region44: #{tpu_custom_call.1} parent=1 // pred_region
      %601 = dma.done [#allocation5], 2048
    $region45: #{tpu_custom_call.1} parent=1 // pred_fallthru
      _
    %602 = vsyncpa [#allocation4], 1
    %603 = vsyncpa [#allocation7], 1
    %604 = vsyncpa [#allocation5], 1

</llo_original>
